<compile_context>
chip_gen: v7x
topology: tpu7x:2x2x1
jax: 0.10.0
libtpu: 0.0.40
codegen_flags: <defaults>
</compile_context>

<pallas_src>
import jax
import jax.numpy as jnp
from jax.experimental import pallas as pl
from jax.experimental.pallas import tpu as pltpu


def film_apply_kernel(gb_ref, hid_ref, out_ref):
    """Streaming broadcast FMA: out = gamma * hidden + beta.

    gb_ref  : (1, 2, H)   [gamma; beta] rows for this batch element
    hid_ref : (1, tT, H)  hidden-state tile
    out_ref : (1, tT, H)
    """
    cd = gb_ref.dtype                       # compute dtype chosen by wrapper
    gamma = gb_ref[0, 0:1, :]               # (1, H) — static slice, zero cost
    beta = gb_ref[0, 1:2, :]                # (1, H)
    h = hid_ref[0].astype(cd)               # (tT, H)
    out_ref[0] = (gamma * h + beta).astype(out_ref.dtype)


def _device_kind():
    try:
        return jax.devices()[0].device_kind.lower()
    except Exception:
        return ""


def _target_tile_bytes(kind):
    # Per-step overhead ~0.35 us; amortize against HBM bandwidth while
    # keeping double-buffered in+out tiles well inside scoped VMEM.
    if "v7" in kind:
        return 8 << 20          # 3.2 TB/s HBM -> bigger tiles pay off
    if "v6" in kind:
        return 4 << 20
    return 2 << 20              # v5e / older: conservative


def _supports_bf16_valu(kind):
    return ("v6" in kind) or ("v7" in kind)


def _pick_seq_tile(T, H, itemsize, target_bytes):
    """Largest fixed seq tile (multiple of 8) with block <= target_bytes."""
    if T * H * itemsize <= target_bytes:
        return T                                      # full slab (always legal)
    t = (target_bytes // (H * itemsize)) // 8 * 8
    return max(8, min(t, T))


def film(hidden_state, embed, wg, bg, wb, bb):
    """FiLM forward.

    hidden_state: (B, T, H); embed: (B, D);
    wg/wb: (D, H) (Linear weights stored pre-transposed); bg/bb: (1, H).
    """
    B, T, H = hidden_state.shape
    kind = _device_kind()

    # --- gamma/beta projection: degenerate M=B GEMM, leave it to XLA ------
    # (fuses the bias, avoids any weight concat and a wasted pallas_call).
    gamma = jnp.dot(embed, wg, preferred_element_type=jnp.float32) + bg  # (B, H)
    beta = jnp.dot(embed, wb, preferred_element_type=jnp.float32) + bb   # (B, H)

    # Compute dtype: native bf16 FMA on chips with a bf16 VALU, else f32.
    if hidden_state.dtype == jnp.bfloat16 and _supports_bf16_valu(kind):
        compute_dtype = jnp.bfloat16
    else:
        compute_dtype = jnp.float32
    gb = jnp.stack([gamma, beta], axis=1).astype(compute_dtype)          # (B, 2, H)

    # --- streaming broadcast FMA over (B, T, H) ---------------------------
    # TODO(synk): if H is not a multiple of 128, repack hidden as
    # (B, T/k, k*H) in the wrapper to keep the output last dim lane-dense.
    tT = _pick_seq_tile(T, H, hidden_state.dtype.itemsize,
                        _target_tile_bytes(kind))
    grid = (B, pl.cdiv(T, tT))

    return pl.pallas_call(
        film_apply_kernel,
        out_shape=jax.ShapeDtypeStruct((B, T, H), hidden_state.dtype),
        grid=grid,
        in_specs=[
            # t-invariant gamma|beta block: only re-fetched at batch boundary.
            pl.BlockSpec((1, 2, H), lambda b, t: (b, 0, 0)),
            pl.BlockSpec((1, tT, H), lambda b, t: (b, t, 0)),
        ],
        out_specs=pl.BlockSpec((1, tT, H), lambda b, t: (b, t, 0)),
        compiler_params=pltpu.CompilerParams(
            dimension_semantics=("parallel", "parallel"),
            vmem_limit_bytes=48 << 20,   # headroom for the larger tiles
        ),
    )(gb, hidden_state)


def film_reference(hidden_state, embed, wg, bg, wb, bb):
    gamma = embed @ wg + bg          # (B, H)
    beta = embed @ wb + bb           # (B, H)
    return gamma[:, None, :] * hidden_state + beta[:, None, :]


if __name__ == "__main__":
    # Small shapes consistent with the module (dim_in -> D, hidden_dim -> H).
    B, T, D, H = 2, 16, 256, 128
    key = jax.random.PRNGKey(0)
    k_h, k_e, k_wg, k_bg, k_wb, k_bb = jax.random.split(key, 6)

    hidden_state = jax.random.normal(k_h, (B, T, H), dtype=jnp.float32)
    embed = jax.random.normal(k_e, (B, D), dtype=jnp.float32)

    # Deterministic parameter init mimicking nn.Linear (uniform +/- 1/sqrt(D)).
    bound = 1.0 / (D ** 0.5)
    # Stored transposed: (D, H) instead of PyTorch's (H, D).
    wg = jax.random.uniform(k_wg, (D, H), jnp.float32, -bound, bound)
    bg = jax.random.uniform(k_bg, (1, H), jnp.float32, -bound, bound)
    wb = jax.random.uniform(k_wb, (D, H), jnp.float32, -bound, bound)
    bb = jax.random.uniform(k_bb, (1, H), jnp.float32, -bound, bound)

    out = film(hidden_state, embed, wg, bg, wb, bb)
    out = jax.block_until_ready(out)

    ref = film_reference(hidden_state, embed, wg, bg, wb, bb)
    assert out.shape == (B, T, H)
    assert jnp.allclose(out, ref, atol=1e-5, rtol=1e-5), "mismatch vs reference"

    print("KERNEL_OK")
</pallas_src>

<mosaic_0001>
module attributes {stable_mosaic.version = 11 : i64} {
  func.func @film_apply_kernel(%arg0: i32, %arg1: i32, %arg2: memref<1x2x128xf32, #tpu.memory_space<vmem>>, %arg3: memref<1x16x128xf32, #tpu.memory_space<vmem>>, %arg4: memref<1x16x128xf32, #tpu.memory_space<vmem>>) attributes {dimension_semantics = [#tpu.dimension_semantics<parallel>, #tpu.dimension_semantics<parallel>], iteration_bounds = array<i64: 2, 1>, scalar_prefetch = 0 : i64, scratch_operands = 0 : i64, tpu.core_type = #tpu.core_type<tc>, window_params = [{transform_indices = @transform_0, window_bounds = array<i64: 1, 2, 128>}, {transform_indices = @transform_1, window_bounds = array<i64: 1, 16, 128>}, {transform_indices = @transform_2, window_bounds = array<i64: 1, 16, 128>}]} {
    %c0 = arith.constant 0 : index
    %c0_0 = arith.constant 0 : index
    %c0_1 = arith.constant 0 : index
    %0 = vector.load %arg2[%c0, %c0_0, %c0_1] : memref<1x2x128xf32, #tpu.memory_space<vmem>>, vector<1x1x128xf32>
    %1 = vector.shape_cast %0 : vector<1x1x128xf32> to vector<1x128xf32>
    %c0_2 = arith.constant 0 : index
    %c1 = arith.constant 1 : index
    %c0_3 = arith.constant 0 : index
    %2 = vector.load %arg2[%c0_2, %c1, %c0_3] : memref<1x2x128xf32, #tpu.memory_space<vmem>>, vector<1x1x128xf32>
    %3 = vector.shape_cast %2 : vector<1x1x128xf32> to vector<1x128xf32>
    %c0_4 = arith.constant 0 : index
    %c0_5 = arith.constant 0 : index
    %c0_6 = arith.constant 0 : index
    %4 = vector.load %arg3[%c0_4, %c0_5, %c0_6] : memref<1x16x128xf32, #tpu.memory_space<vmem>>, vector<1x16x128xf32>
    %5 = vector.shape_cast %4 : vector<1x16x128xf32> to vector<16x128xf32>
    %6 = vector.broadcast %1 : vector<1x128xf32> to vector<16x128xf32>
    %7 = arith.mulf %6, %5 : vector<16x128xf32>
    %8 = vector.broadcast %3 : vector<1x128xf32> to vector<16x128xf32>
    %9 = arith.addf %7, %8 : vector<16x128xf32>
    %c0_7 = arith.constant 0 : index
    %c0_8 = arith.constant 0 : index
    %c0_9 = arith.constant 0 : index
    %10 = vector.load %arg4[%c0_7, %c0_8, %c0_9] : memref<1x16x128xf32, #tpu.memory_space<vmem>>, vector<1x16x128xf32>
    %11 = vector.shape_cast %10 : vector<1x16x128xf32> to vector<16x128xf32>
    %12 = vector.shape_cast %9 : vector<16x128xf32> to vector<1x16x128xf32>
    tpu.vector_store %arg4[%c0_7, %c0_8, %c0_9], %12 {strides = array<i32>} : memref<1x16x128xf32, #tpu.memory_space<vmem>>, vector<1x16x128xf32>,
    return
  }
  func.func @transform_0(%arg0: i32, %arg1: i32) -> (i32, i32, i32) {
    %c0_i32 = arith.constant 0 : i32
    %c0_i32_0 = arith.constant 0 : i32
    %c0_i32_1 = arith.constant 0 : i32
    return %arg0, %c0_i32, %c0_i32_0 : i32, i32, i32
  }
  func.func @transform_1(%arg0: i32, %arg1: i32) -> (i32, i32, i32) {
    %c0_i32 = arith.constant 0 : i32
    %c0_i32_0 = arith.constant 0 : i32
    return %arg0, %arg1, %c0_i32 : i32, i32, i32
  }
  func.func @transform_2(%arg0: i32, %arg1: i32) -> (i32, i32, i32) {
    %c0_i32 = arith.constant 0 : i32
    %c0_i32_0 = arith.constant 0 : i32
    return %arg0, %arg1, %c0_i32 : i32, i32, i32
  }
}

</mosaic_0001>

<llo_original>
// kernel: tpu_custom_call.1
$region0: #{tpu_custom_call.1}
  #allocation0 [shape = 'u32[]', space=smem, size = 0x4, offset = 0x4, fixed_abs, tag = 'smem constant byte address 0x4 - core index']
  #allocation1 [shape = 'u32[144,128]{1,0:T(1,128)}', space=vmem, size = 0x12000, scoped, tag = 'internal scratch']
  %s0 = inlined_call_operand.hbm [shape: f32[2,2,128], index: 0, kind: input, shape index: {}]
  %s1 = inlined_call_operand.hbm [shape: f32[2,16,128], index: 1, kind: input, shape index: {}]
  %s2 = inlined_call_operand.hbm [shape: f32[2,16,128], index: 2, kind: output, shape index: {}]
  %s3 = sld [smem:[#allocation0]]
  $region49: #{tpu_custom_call.1} parent=0
    _
  %s5 = ssub.s32 1, %s3
  %s6 = scalar_select 0, %s5, %s3
  $region1: #{tpu_custom_call.1} parent=0
    #allocation2 [shape = 'u8[2048]{0}', space=vmem, size = 0x800, scoped, tag = 'input window, operand 0']
    #allocation3 [shape = 's32[2]{0}', space=sflag, size = 0x8, scoped, tag = 'scoped memory for tpu_custom_call.1']
    #allocation4 [shape = 's32[2]{0}', space=sflag, size = 0x8, scoped, tag = 'scoped memory for tpu_custom_call.1']
    #allocation5 [shape = 'u8[16384]{0}', space=vmem, size = 0x4000, scoped, tag = 'input window, operand 1']
    #allocation6 [shape = 's32[2]{0}', space=sflag, size = 0x8, scoped, tag = 'scoped memory for tpu_custom_call.1']
    #allocation7 [shape = 'u8[16384]{0}', space=vmem, size = 0x4000, scoped, tag = 'output window, operand 0']
    %7 = vsyncpa [#allocation3], 0
    %s8 = scalar_lea.sflag [#allocation3], 1
    %9 = vsyncpa %s8, 0
    %10 = vsyncpa [#allocation6], 0
    %s11 = scalar_lea.sflag [#allocation6], 1
    %12 = vsyncpa %s11, 0
    %13 = vsyncpa [#allocation4], 0
    %s14 = scalar_lea.sflag [#allocation4], 1
    %15 = vsyncpa %s14, 0
    loop: start=0, step=1, limit=4
    $region2: #{tpu_custom_call.1} parent=1 // loop_pre_header
      _
    $region3: #{tpu_custom_call.1} parent=1 // loop_header
      %s17 = sphi 0, %s21
      %p18 = scmp.ge.s32.totalorder %s17, 4
      %s24 = sphi 0, %s36
      %s25 = sphi 0, %s32
      %s26 = sphi 0, %s24
      %s27 = sphi 0, %s25
      %s28 = sphi 0, %s26
      %s29 = sphi 0, %s27
      %s39 = sphi 0, %s41
      %s42 = sphi 0, %s39
      %s43 = sphi 0, %s42
      %s59 = sphi 0, %s43
      %s67 = sphi 0, %s69
      %s70 = sphi 0, %s67
      %s71 = sphi 0, %s70
      %s87 = sphi 0, %s71
      %s95 = sphi 0, %s97
      %s98 = sphi 0, %s95
      %s99 = sphi 0, %s98
      %s115 = sphi 0, %s99
    $region4: #{tpu_custom_call.1} parent=1 // loop_header_branch
      %20 = sbr.rel (%p18) target = $region8
    $region5: #{tpu_custom_call.1} parent=1 // loop_body
      %s22 = ssub.s32 %s17, 1
      %s23 = ssub.s32 %s17, 2
      %s30 = sadd.s32 1, %s25
      %p31 = scmp.ge.s32.totalorder %s30, 1
      %s32 = scalar_select %p31, 0, %s30
      %s33 = sadd.s32 1, %s24
      %s34 = scalar_select %p31, %s33, %s24
      %p35 = scmp.ge.s32.totalorder %s34, 2
      %s36 = scalar_select %p35, 0, %s34
      %s37 = ssub.s32 %s24, %s36
      %p38 = scmp.eq.s32.totalorder %s37, 0
      %s40 = sadd.s32 %s39, 1
      %s41 = scalar_select %p38, %s39, %s40
      %p44 = pneg %p38
      %p45 = scmp.eq.s32.totalorder %s17, 1
      %p46 = por %p44, %p45
      %p47 = scmp.ne.s32.totalorder %s39, %s42
      %p48 = scmp.eq.s32.totalorder %s17, 0
      %p49 = por %p47, %p48
      %p50 = scmp.ne.s32.totalorder %s39, %s42
      %p51 = scmp.eq.s32.totalorder %s22, 1
      %p52 = por %p50, %p51
      %p53 = scmp.ne.s32.totalorder %s42, %s43
      %p54 = scmp.eq.s32.totalorder %s22, 0
      %p55 = por %p53, %p54
      %p56 = scmp.ne.s32.totalorder %s42, %s43
      %p57 = scmp.eq.s32.totalorder %s23, 1
      %p58 = por %p56, %p57
      %p60 = scmp.ne.s32.totalorder %s43, %s59
      %p61 = scmp.eq.s32.totalorder %s23, 0
      %p62 = por %p60, %p61
      %s63 = ssub.s32 %s24, %s36
      %s64 = ssub.s32 %s25, %s32
      %s65 = sor.u32 %s63, %s64
      %p66 = scmp.eq.s32.totalorder %s65, 0
      %s68 = sadd.s32 %s67, 1
      %s69 = scalar_select %p66, %s67, %s68
      %p72 = pneg %p66
      %p73 = scmp.eq.s32.totalorder %s17, 1
      %p74 = por %p72, %p73
      %p75 = scmp.ne.s32.totalorder %s67, %s70
      %p76 = scmp.eq.s32.totalorder %s17, 0
      %p77 = por %p75, %p76
      %p78 = scmp.ne.s32.totalorder %s67, %s70
      %p79 = scmp.eq.s32.totalorder %s22, 1
      %p80 = por %p78, %p79
      %p81 = scmp.ne.s32.totalorder %s70, %s71
      %p82 = scmp.eq.s32.totalorder %s22, 0
      %p83 = por %p81, %p82
      %p84 = scmp.ne.s32.totalorder %s70, %s71
      %p85 = scmp.eq.s32.totalorder %s23, 1
      %p86 = por %p84, %p85
      %p88 = scmp.ne.s32.totalorder %s71, %s87
      %p89 = scmp.eq.s32.totalorder %s23, 0
      %p90 = por %p88, %p89
      %s91 = ssub.s32 %s24, %s36
      %s92 = ssub.s32 %s25, %s32
      %s93 = sor.u32 %s91, %s92
      %p94 = scmp.eq.s32.totalorder %s93, 0
      %s96 = sadd.s32 %s95, 1
      %s97 = scalar_select %p94, %s95, %s96
      %p100 = pneg %p94
      %p101 = scmp.eq.s32.totalorder %s17, 1
      %p102 = por %p100, %p101
      %p103 = scmp.ne.s32.totalorder %s95, %s98
      %p104 = scmp.eq.s32.totalorder %s17, 0
      %p105 = por %p103, %p104
      %p106 = scmp.ne.s32.totalorder %s95, %s98
      %p107 = scmp.eq.s32.totalorder %s22, 1
      %p108 = por %p106, %p107
      %p109 = scmp.ne.s32.totalorder %s98, %s99
      %p110 = scmp.eq.s32.totalorder %s22, 0
      %p111 = por %p109, %p110
      %p112 = scmp.ne.s32.totalorder %s98, %s99
      %p113 = scmp.eq.s32.totalorder %s23, 1
      %p114 = por %p112, %p113
      %p116 = scmp.ne.s32.totalorder %s99, %s115
      %p117 = scmp.eq.s32.totalorder %s23, 0
      %p118 = por %p116, %p117
      %p119 = scmp.le.s32.totalorder 1, %s17
      %p120 = scmp.lt.s32.totalorder %s17, 3
      %p121 = pnand %p119, %p120
      %p122 = pneg %p121
      // Predicated region
      $region9: #{tpu_custom_call.1} parent=5 // pred_check
        _
      $region10: #{tpu_custom_call.1} parent=5 // pred_check_branch
        %124 = sbr.rel (%p121) target = $region12
      $region11: #{tpu_custom_call.1} parent=5 // pred_region
        %s125 = ssub.s32 %s17, 1
      $region12: #{tpu_custom_call.1} parent=5 // pred_fallthru
        _
      %p126 = scmp.lt.s32.totalorder %s17, 2
      // Predicated region
      $region13: #{tpu_custom_call.1} parent=5 // pred_check
        %p127 = pneg %p126
      $region14: #{tpu_custom_call.1} parent=5 // pred_check_branch
        %129 = sbr.rel (%p127) target = $region16
      $region15: #{tpu_custom_call.1} parent=5 // pred_region
        // Predicated region
        $region17: #{tpu_custom_call.1} parent=15 // pred_check
          %p130 = pneg %p49
        $region18: #{tpu_custom_call.1} parent=15 // pred_check_branch
          %132 = sbr.rel (%p130) target = $region20
        $region19: #{tpu_custom_call.1} parent=15 // pred_region
          %s133 = sand.u32 %s39, 1
          %s134 = scalar_lea.sflag [#allocation3], %s133
          %s135 = sand.u32 %s39, 1
          %s136 = smul.addr %s135, 2
          %s137 = scalar_lea.vmem [#allocation2], %s136
          %s139 = ssub.s32 32, 32
          %140 = vsyncadd %s134, %s139
          %s141 = smul.addr %s24, 32
          %s142 = scalar_lea.hbm %s0, %s141
          %s144 = sshll.u32 %s137, 4
          %s145 = int_to_ptr.vmem [resolvable:$true] %s144
          %147 = dma.hbm_to_vmem [thread:$0]  %s142, 32, %s145, %s134
        $region20: #{tpu_custom_call.1} parent=15 // pred_fallthru
          _
        // Predicated region
        $region21: #{tpu_custom_call.1} parent=15 // pred_check
          %p148 = pneg %p77
        $region22: #{tpu_custom_call.1} parent=15 // pred_check_branch
          %150 = sbr.rel (%p148) target = $region24
        $region23: #{tpu_custom_call.1} parent=15 // pred_region
          %s151 = sand.u32 %s67, 1
          %s152 = scalar_lea.sflag [#allocation6], %s151
          %s153 = sand.u32 %s67, 1
          %s154 = smul.addr %s153, 16
          %s155 = scalar_lea.vmem [#allocation5], %s154
          %s156 = smul.u32 2, %s25
          %s158 = ssub.s32 256, 256
          %159 = vsyncadd %s152, %s158
          %s160 = smul.addr %s24, 2
          %s161 = sadd.s32 %s156, %s160
          %s162 = smul.addr %s161, 128
          %s163 = scalar_lea.hbm %s1, %s162
          %s164 = sshll.u32 %s155, 4
          %s165 = int_to_ptr.vmem [resolvable:$true] %s164
          %170 = dma.hbm_to_vmem [thread:$0]  %s163, 256, %s165, %s152, 128, 128, 8
        $region24: #{tpu_custom_call.1} parent=15 // pred_fallthru
          _
      $region16: #{tpu_custom_call.1} parent=5 // pred_fallthru
        _
      %p171 = scmp.le.s32.totalorder 1, %s17
      %p172 = scmp.lt.s32.totalorder %s17, 3
      %p173 = pnand %p171, %p172
      %p174 = pneg %p173
      // Predicated region
      $region25: #{tpu_custom_call.1} parent=5 // pred_check
        _
      $region26: #{tpu_custom_call.1} parent=5 // pred_check_branch
        %176 = sbr.rel (%p173) target = $region28
      $region27: #{tpu_custom_call.1} parent=5 // pred_region
        %s177 = ssub.s32 %s17, 1
        %s178 = sand.u32 %s42, 1
        %s179 = scalar_lea.sflag [#allocation3], %s178
        %s180 = sand.u32 %s42, 1
        %s181 = smul.addr %s180, 2
        %s182 = scalar_lea.vmem [#allocation2], %s181
        // Predicated region
        $region29: #{tpu_custom_call.1} parent=27 // pred_check
          %p183 = pneg %p55
        $region30: #{tpu_custom_call.1} parent=27 // pred_check_branch
          %185 = sbr.rel (%p183) target = $region32
        $region31: #{tpu_custom_call.1} parent=27 // pred_region
          %186 = dma.done %s179, 32
        $region32: #{tpu_custom_call.1} parent=27 // pred_fallthru
          _
        %s187 = sand.u32 %s70, 1
        %s188 = scalar_lea.sflag [#allocation6], %s187
        %s189 = sand.u32 %s70, 1
        %s190 = smul.addr %s189, 16
        %s191 = scalar_lea.vmem [#allocation5], %s190
        // Predicated region
        $region33: #{tpu_custom_call.1} parent=27 // pred_check
          %p192 = pneg %p83
        $region34: #{tpu_custom_call.1} parent=27 // pred_check_branch
          %194 = sbr.rel (%p192) target = $region36
        $region35: #{tpu_custom_call.1} parent=27 // pred_region
          %195 = dma.done %s188, 256
        $region36: #{tpu_custom_call.1} parent=27 // pred_fallthru
          _
        %s196 = sand.u32 %s42, 1
        %s197 = scalar_lea.sflag [#allocation3], %s196
        %s198 = sand.u32 %s42, 1
        %s199 = smul.addr %s198, 2
        %s200 = scalar_lea.vmem [#allocation2], %s199
        %p201 = pneg %p55
        %p202 = pneg %p52
        %s203 = sand.u32 %s70, 1
        %s204 = scalar_lea.sflag [#allocation6], %s203
        %s205 = sand.u32 %s70, 1
        %s206 = smul.addr %s205, 16
        %s207 = scalar_lea.vmem [#allocation5], %s206
        %p208 = pneg %p83
        %p209 = pneg %p80
        %p210 = pneg %p111
        %p211 = pneg %p108
        %s212 = sand.u32 %s98, 1
        %s213 = scalar_lea.sflag [#allocation4], %s212
        %s214 = sand.u32 %s98, 1
        %s215 = smul.addr %s214, 16
        %s216 = scalar_lea.vmem [#allocation7], %s215
        %s217 = smul.u32 2, %s27
        %s218 = smul.u32 2, %s27
        %v219 = vld [vmem:[%s182] sm:$0x1]
        %v220 = vld [vmem:[%s182 + $0x1] sm:$0x1]
        %v221 = vld [vmem:[%s191] sm:$0xff]
        %v222 = vld [vmem:[%s191 + $0x8] sm:$0xff]
        %v223 = vlaneseq
        %v224 = vshrl.u32 %v223, 7
        %v225 = vsub.s32 0, %v224
        %v226 = vrot.slane %v219, %v225
        %v227 = vmul.f32 %v226, %v221
        %v228 = vmul.f32 %v226, %v222
        %v229 = vlaneseq
        %v230 = vshrl.u32 %v229, 7
        %v231 = vsub.s32 0, %v230
        %v232 = vrot.slane %v220, %v231
        %v233 = vadd.f32 %v227, %v232
        %v234 = vadd.f32 %v228, %v232
        %235 = vst [vmem:[%s216] sm:$0xff] %v233
        %236 = vst [vmem:[%s216 + $0x8] sm:$0xff] %v234
        %s237 = sand.u32 %s98, 1
        %s238 = scalar_lea.sflag [#allocation4], %s237
        %s239 = sand.u32 %s98, 1
        %s240 = smul.addr %s239, 16
        %s241 = scalar_lea.vmem [#allocation7], %s240
        // Predicated region
        $region37: #{tpu_custom_call.1} parent=27 // pred_check
          %p242 = pneg %p108
        $region38: #{tpu_custom_call.1} parent=27 // pred_check_branch
          %244 = sbr.rel (%p242) target = $region40
        $region39: #{tpu_custom_call.1} parent=27 // pred_region
          %s245 = smul.u32 2, %s27
          %s247 = ssub.s32 256, 256
          %248 = vsyncadd %s238, %s247
          %s249 = smul.addr %s26, 2
          %s250 = sadd.s32 %s245, %s249
          %s251 = smul.addr %s250, 128
          %s252 = scalar_lea.hbm %s2, %s251
          %s253 = sshll.u32 %s241, 4
          %s254 = int_to_ptr.vmem [resolvable:$true] %s253
          %259 = dma.vmem_to_hbm [thread:$0]  %s254, 256, %s252, %s238, 128, 128, 8
        $region40: #{tpu_custom_call.1} parent=27 // pred_fallthru
          _
      $region28: #{tpu_custom_call.1} parent=5 // pred_fallthru
        _
      %p260 = scmp.le.s32.totalorder 2, %s17
      // Predicated region
      $region41: #{tpu_custom_call.1} parent=5 // pred_check
        %p261 = pneg %p260
      $region42: #{tpu_custom_call.1} parent=5 // pred_check_branch
        %263 = sbr.rel (%p261) target = $region44
      $region43: #{tpu_custom_call.1} parent=5 // pred_region
        %s264 = ssub.s32 %s17, 2
        // Predicated region
        $region45: #{tpu_custom_call.1} parent=43 // pred_check
          %p265 = pneg %p114
        $region46: #{tpu_custom_call.1} parent=43 // pred_check_branch
          %267 = sbr.rel (%p265) target = $region48
        $region47: #{tpu_custom_call.1} parent=43 // pred_region
          %s268 = sand.u32 %s99, 1
          %s269 = scalar_lea.sflag [#allocation4], %s268
          %s270 = sand.u32 %s99, 1
          %s271 = smul.addr %s270, 16
          %s272 = scalar_lea.vmem [#allocation7], %s271
          %273 = dma.done %s269, 256
        $region48: #{tpu_custom_call.1} parent=43 // pred_fallthru
          _
      $region44: #{tpu_custom_call.1} parent=5 // pred_fallthru
        _
    $region6: #{tpu_custom_call.1} parent=1 // loop_footer
      %s21 = sadd.s32 1, %s17
    $region7: #{tpu_custom_call.1} parent=1 // loop_footer_branch
      %16 = sbr.rel target = $region3
    $region8: #{tpu_custom_call.1} parent=1 // loop_exit
      _
    %274 = vsyncpa [#allocation3], 1
    %s275 = scalar_lea.sflag [#allocation3], 1
    %276 = vsyncpa %s275, 1
    %277 = vsyncpa [#allocation6], 1
    %s278 = scalar_lea.sflag [#allocation6], 1
    %279 = vsyncpa %s278, 1
    %280 = vsyncpa [#allocation4], 1
    %s281 = scalar_lea.sflag [#allocation4], 1
    %282 = vsyncpa %s281, 1

</llo_original>
